<compile_context>
chip_gen: v7x
topology: tpu7x:2x2x1
jax: 0.10.0
libtpu: 0.0.40
codegen_flags: <defaults>
</compile_context>

<pallas_src>
import functools

import jax
import jax.numpy as jnp
import numpy as np
from jax.experimental import pallas as pl
from jax.experimental.pallas import tpu as pltpu


# ---------------------------------------------------------------------------
# kernels
# ---------------------------------------------------------------------------
def _blockdiag_kernel(x_ref, l_ref, w_ref, o_ref, *, n, e_edges, k_order):
    """Small-graph path: one block-diagonal Krylov chain covers all edges.

    x_ref : (1, N, TB*F)            X batch tile, batch folded into lanes (tb, f)
    l_ref : (E*N, E*N)              block-diagonal Laplacian (VMEM resident)
    w_ref : (E, (K+1)*TB*F, TB*Dp)  fused kron(I_TB, W_{e,k}) weights (resident)
    o_ref : (1, E, N, TB*Dp)        per-edge outputs, lane order (tb, d)
    """
    xf = x_ref[0]                                       # (N, TB*F)
    cdt = xf.dtype
    # Tile X down the node axis so row block e is fed through Laplacian L_e.
    xbig = jnp.concatenate([xf] * e_edges, axis=0) if e_edges > 1 else xf
    lap = l_ref[...]                                    # (E*N, E*N)

    # Krylov columns [X | L X | ... | L^K X]; concat on the lane axis only
    # (no sublane relayout).  Operands stay in compute dtype, f32 MXU accum.
    cols = [xbig]
    cur = xbig
    for _ in range(k_order):
        cur = jnp.dot(lap, cur, preferred_element_type=jnp.float32).astype(cdt)
        cols.append(cur)
    krylov = jnp.concatenate(cols, axis=-1)             # (E*N, (K+1)*TB*F)

    # One fused weight matmul + ReLU per edge, stored directly into its own
    # row block of the output tile (no full-slab concatenate / extra copy).
    for e in range(e_edges):
        rows = krylov[e * n:(e + 1) * n, :]             # sublane-aligned (N % 8 == 0)
        y = jnp.dot(rows, w_ref[e], preferred_element_type=jnp.float32)
        o_ref[0, e, :, :] = jnp.maximum(y, 0.0).astype(o_ref.dtype)


def _per_edge_kernel(x_ref, l_ref, w_ref, o_ref, *, k_order):
    """Large-graph fallback: one edge per grid step (L_e / W_e streamed).

    x_ref : (1, N, TB*F);  l_ref : (1, N, N)
    w_ref : (1, (K+1)*TB*F, TB*Dp);  o_ref : (1, 1, N, TB*Dp)
    """
    xf = x_ref[0]
    cdt = xf.dtype
    lap = l_ref[0]
    cols = [xf]
    cur = xf
    for _ in range(k_order):
        cur = jnp.dot(lap, cur, preferred_element_type=jnp.float32).astype(cdt)
        cols.append(cur)
    krylov = jnp.concatenate(cols, axis=-1)             # (N, (K+1)*TB*F)
    y = jnp.dot(krylov, w_ref[0], preferred_element_type=jnp.float32)
    o_ref[0, 0, :, :] = jnp.maximum(y, 0.0).astype(o_ref.dtype)


# ---------------------------------------------------------------------------
# wrapper helpers
# ---------------------------------------------------------------------------
def _pick_batch_tile(batch, feat, target_lanes=512):
    """Largest divisor of `batch` keeping the folded lane width <= target,
    while guaranteeing >= 2 grid steps (v7x: two TensorCores + pipelining) and
    preferring TB*feat that is a dense multiple of 128 lanes."""
    if batch <= 1:
        return 1
    divs = [d for d in range(1, batch + 1) if batch % d == 0]
    cands = [d for d in divs if batch // d >= 2] or [1]
    ok = [d for d in cands if d * feat <= max(target_lanes, feat)] or [min(cands)]
    dense = [d for d in ok if (d * feat) % 128 == 0]
    return max(dense) if dense else max(ok)


def _choose_vmem_limit(bytes_needed):
    """Scoped-VMEM request sized from the actual buffers plus headroom.
    Stays <= 48 MiB (comfortable within v7x's 64 MiB/TC); only goes higher when
    the buffers themselves need it (then it only fits v5e/v6e's 128 MiB)."""
    need = int(bytes_needed * 1.4) + (4 << 20)
    if need <= (48 << 20):
        return max(need, 24 << 20)
    return min(need, 112 << 20)


def edge_laplacian_gcn(X, L, W, *, k_order, compute_dtype=jnp.bfloat16,
                       out_dtype=None, batch_tile=None, force_per_edge=False,
                       blockdiag_max_rows=256):
    """X: (B, N, F); L: (N, N, E); W: (E, K+1, F, Dp). Returns (B, E*N, Dp)."""
    B, N, F = X.shape
    E = L.shape[2]
    Dp = W.shape[-1]
    K1 = k_order + 1
    assert W.shape == (E, K1, F, Dp)

    cdt = compute_dtype
    odt = out_dtype if out_dtype is not None else cdt
    TB = batch_tile if batch_tile is not None else _pick_batch_tile(B, F)
    assert B % TB == 0
    nbt = B // TB

    use_blockdiag = ((not force_per_edge)
                     and (E * N <= blockdiag_max_rows)
                     and (N % 8 == 0 or E == 1))

    # ---- operand layout (plain-JAX glue) -------------------------------------
    # X: (B, N, F) -> (nbt, N, TB*F); lane index = tb*F + f
    Xf = (X.astype(cdt)
            .reshape(nbt, TB, N, F)
            .transpose(0, 2, 1, 3)
            .reshape(nbt, N, TB * F))
    # W: (E, K+1, F, Dp) -> kron(I_TB, W_{e,k}) stacked over k:
    #   rows ordered (k, tb, f) to match the lane-folded Krylov concat,
    #   cols ordered (tb, d)    to match the output lane layout.
    eye_tb = jnp.eye(TB, dtype=jnp.float32)
    Wf = (jnp.einsum('ekfd,bc->ekbfcd', W.astype(jnp.float32), eye_tb)
            .reshape(E, K1 * TB * F, TB * Dp)
            .astype(cdt))
    # L: (N, N, E) -> (E, N, N)
    Lt = jnp.transpose(L, (2, 0, 1)).astype(cdt)

    out_shape = jax.ShapeDtypeStruct((nbt, E, N, TB * Dp), odt)
    c_isz = np.dtype(Xf.dtype).itemsize
    o_isz = np.dtype(out_shape.dtype).itemsize
    x_tile_b = N * TB * F * c_isz

    if use_blockdiag:
        # Block-diagonal Laplacian: one Krylov chain covers all E edges/step.
        Lop = (jnp.einsum('enm,ef->enfm', Lt, jnp.eye(E, dtype=cdt))
                 .reshape(E * N, E * N))
        kernel = functools.partial(_blockdiag_kernel, n=N, e_edges=E,
                                   k_order=k_order)
        grid = (nbt,)
        in_specs = [
            pl.BlockSpec((1, N, TB * F), lambda i: (i, 0, 0)),             # X streamed
            pl.BlockSpec((E * N, E * N), lambda i: (0, 0)),                # L resident
            pl.BlockSpec((E, K1 * TB * F, TB * Dp), lambda i: (0, 0, 0)),  # W resident
        ]
        out_specs = pl.BlockSpec((1, E, N, TB * Dp), lambda i: (i, 0, 0, 0))
        dims = ("parallel",)
        flops = nbt * (k_order * 2 * (E * N) ** 2 * (TB * F)
                       + E * 2 * N * (K1 * TB * F) * (TB * Dp))
        o_tile_b = E * N * TB * Dp * o_isz
        resident_b = (int(Lop.size) + int(Wf.size)) * c_isz
        stream_b = x_tile_b + o_tile_b
        live_b = (K1 + 1) * (E * N) * (TB * F) * 4 + (E * N) * (K1 * TB * F) * 4
        operands = (Xf, Lop, Wf)
    else:
        kernel = functools.partial(_per_edge_kernel, k_order=k_order)
        grid = (nbt, E)
        in_specs = [
            pl.BlockSpec((1, N, TB * F), lambda i, e: (i, 0, 0)),          # X reused over e
            pl.BlockSpec((1, N, N), lambda i, e: (e, 0, 0)),               # L_e streamed
            pl.BlockSpec((1, K1 * TB * F, TB * Dp), lambda i, e: (e, 0, 0)),
        ]
        out_specs = pl.BlockSpec((1, 1, N, TB * Dp), lambda i, e: (i, e, 0, 0))
        dims = ("parallel", "arbitrary")
        flops = nbt * E * (k_order * 2 * N * N * (TB * F)
                           + 2 * N * (K1 * TB * F) * (TB * Dp))
        o_tile_b = N * TB * Dp * o_isz
        resident_b = 0
        stream_b = (x_tile_b + o_tile_b + N * N * c_isz
                    + K1 * TB * F * TB * Dp * c_isz)
        live_b = (K1 + 1) * N * (TB * F) * 4 + N * (K1 * TB * F) * 4
        operands = (Xf, Lt, Wf)

    bytes_accessed = (sum(int(a.size) * np.dtype(a.dtype).itemsize
                          for a in operands)
                      + nbt * E * N * TB * Dp * o_isz)
    vmem_limit = _choose_vmem_limit(2 * (resident_b + stream_b) + live_b)

    out = pl.pallas_call(
        kernel,
        out_shape=out_shape,
        grid_spec=pltpu.PrefetchScalarGridSpec(
            num_scalar_prefetch=0,
            grid=grid,
            in_specs=in_specs,
            out_specs=out_specs,
        ),
        compiler_params=pltpu.CompilerParams(
            dimension_semantics=dims,
            vmem_limit_bytes=vmem_limit),
        cost_estimate=pl.CostEstimate(flops=int(flops), transcendentals=0,
                                      bytes_accessed=int(bytes_accessed)),
    )(*operands)

    # ---- recover the torch layout (B, E*N, Dp) -------------------------------
    # (Consumers happy with the (nbt, E, N, TB*Dp) kernel layout can skip this
    #  transpose and save one HBM round-trip of the output.)
    out = (out.reshape(nbt, E, N, TB, Dp)
              .transpose(0, 3, 1, 2, 4)          # (bt, tb, e, n, d)
              .reshape(B, E * N, Dp))
    return out


# ---------------------------------------------------------------------------
# reference + demo
# ---------------------------------------------------------------------------
def _xavier_uniform(key, shape, fan_in, fan_out, dtype=jnp.float32):
    limit = (6.0 / (fan_in + fan_out)) ** 0.5
    return jax.random.uniform(key, shape, dtype, minval=-limit, maxval=limit)


def _reference(X, L, W, k_order):
    # pure-JAX f32 reference mirroring the torch loops
    E = L.shape[2]
    outs = []
    for e in range(E):
        Le = L[:, :, e].astype(jnp.float32)
        acc = jnp.zeros((X.shape[0], X.shape[1], W.shape[-1]), jnp.float32)
        Lk = jnp.eye(Le.shape[0], dtype=jnp.float32)
        for k in range(k_order + 1):
            acc = acc + jnp.einsum("nm,bmf,fd->bnd", Lk,
                                   X.astype(jnp.float32),
                                   W[e, k].astype(jnp.float32))
            Lk = Le @ Lk
        outs.append(jax.nn.relu(acc))
    return jnp.concatenate(outs, axis=1)


if __name__ == "__main__":
    # small shapes: batch=2, nodes=16, input_dim=8, edge_input_dim=4,
    # output_dim=32 (=> per-edge output dim 8), k=2
    B, N, F = 2, 16, 8
    edge_input_dim = 4
    output_dim = 32
    K = 2
    Dp = output_dim // edge_input_dim

    root = jax.random.PRNGKey(0)
    kx, kl, kw = jax.random.split(root, 3)

    X = jax.random.normal(kx, (B, N, F), jnp.float32)
    L = jax.random.normal(kl, (N, N, edge_input_dim), jnp.float32)

    # deterministic xavier-uniform init of each Linear(F -> Dp, bias=False),
    # stored already transposed so the kernel computes X @ W directly
    wkeys = jax.random.split(kw, edge_input_dim * (K + 1))
    W = jnp.stack([
        jnp.stack([
            _xavier_uniform(wkeys[e * (K + 1) + k], (F, Dp), fan_in=F, fan_out=Dp)
            for k in range(K + 1)
        ])
        for e in range(edge_input_dim)
    ])  # (E, K+1, F, Dp)

    ref = _reference(X, L, W, K)

    # f32 operands, block-diagonal small-graph path: faithful to torch numerics
    out_f32 = jax.block_until_ready(
        edge_laplacian_gcn(X, L, W, k_order=K, compute_dtype=jnp.float32))
    assert out_f32.shape == (B, edge_input_dim * N, Dp)
    assert jnp.allclose(out_f32, ref, atol=1e-4, rtol=1e-4)

    # f32 operands, per-edge streamed path (the large-graph fallback)
    out_pe = jax.block_until_ready(
        edge_laplacian_gcn(X, L, W, k_order=K, compute_dtype=jnp.float32,
                           force_per_edge=True))
    assert out_pe.shape == (B, edge_input_dim * N, Dp)
    assert jnp.allclose(out_pe, ref, atol=1e-4, rtol=1e-4)

    # default production setting: bf16 operands/output, f32 MXU accumulation
    out_bf16 = jax.block_until_ready(edge_laplacian_gcn(X, L, W, k_order=K))
    assert out_bf16.shape == (B, edge_input_dim * N, Dp)
    assert jnp.allclose(out_bf16.astype(jnp.float32), ref, atol=5e-1, rtol=5e-2)

    print("KERNEL_OK")
</pallas_src>

<mosaic_0001>
module attributes {stable_mosaic.version = 11 : i64} {
  func.func @_blockdiag_kernel(%arg0: i32, %arg1: memref<1x16x8xf32, #tpu.memory_space<vmem>>, %arg2: memref<64x64xf32, #tpu.memory_space<vmem>>, %arg3: memref<4x24x8xf32, #tpu.memory_space<vmem>>, %arg4: memref<1x4x16x8xf32, #tpu.memory_space<vmem>>) attributes {dimension_semantics = [#tpu.dimension_semantics<parallel>], iteration_bounds = array<i64: 2>, scalar_prefetch = 0 : i64, scratch_operands = 0 : i64, tpu.core_type = #tpu.core_type<tc>, window_params = [{transform_indices = @transform_0, window_bounds = array<i64: 1, 16, 8>}, {pipeline_mode = #tpu.pipeline_mode<synchronous>, transform_indices = @transform_1, window_bounds = array<i64: 64, 64>}, {pipeline_mode = #tpu.pipeline_mode<synchronous>, transform_indices = @transform_2, window_bounds = array<i64: 4, 24, 8>}, {transform_indices = @transform_3, window_bounds = array<i64: 1, 4, 16, 8>}]} {
    %c0 = arith.constant 0 : index
    %c0_0 = arith.constant 0 : index
    %c0_1 = arith.constant 0 : index
    %0 = vector.load %arg1[%c0, %c0_0, %c0_1] : memref<1x16x8xf32, #tpu.memory_space<vmem>>, vector<1x16x8xf32>
    %1 = vector.shape_cast %0 : vector<1x16x8xf32> to vector<16x8xf32>
    %2 = tpu.concatenate %1, %1, %1, %1 in 0 : vector<16x8xf32>, vector<16x8xf32>, vector<16x8xf32>, vector<16x8xf32> -> vector<64x8xf32>
    %c0_2 = arith.constant 0 : index
    %c0_3 = arith.constant 0 : index
    %3 = vector.load %arg2[%c0_2, %c0_3] : memref<64x64xf32, #tpu.memory_space<vmem>>, vector<64x64xf32>
    %cst = arith.constant dense<0.000000e+00> : vector<64x8xf32>
    %4 = tpu.matmul %3, %2, %cst {dimension_numbers = #tpu.dot_dimension_numbers<[1], [0], [0], [1], [0, 0, 1, 1], [], []>} : vector<64x64xf32>, vector<64x8xf32>, vector<64x8xf32> -> vector<64x8xf32>
    %cst_4 = arith.constant dense<0.000000e+00> : vector<64x8xf32>
    %5 = tpu.matmul %3, %4, %cst_4 {dimension_numbers = #tpu.dot_dimension_numbers<[1], [0], [0], [1], [0, 0, 1, 1], [], []>} : vector<64x64xf32>, vector<64x8xf32>, vector<64x8xf32> -> vector<64x8xf32>
    %6 = tpu.concatenate %2, %4, %5 in 1 : vector<64x8xf32>, vector<64x8xf32>, vector<64x8xf32> -> vector<64x24xf32>
    %7 = vector.extract_strided_slice %6 {offsets = [0, 0], sizes = [16, 24], strides = [1, 1]} : vector<64x24xf32> to vector<16x24xf32>
    %c0_5 = arith.constant 0 : index
    %c0_6 = arith.constant 0 : index
    %c0_7 = arith.constant 0 : index
    %8 = vector.load %arg3[%c0_5, %c0_6, %c0_7] : memref<4x24x8xf32, #tpu.memory_space<vmem>>, vector<1x24x8xf32>
    %9 = vector.shape_cast %8 : vector<1x24x8xf32> to vector<24x8xf32>
    %cst_8 = arith.constant dense<0.000000e+00> : vector<16x8xf32>
    %10 = tpu.matmul %7, %9, %cst_8 {dimension_numbers = #tpu.dot_dimension_numbers<[1], [0], [0], [1], [0, 0, 1, 1], [], []>} : vector<16x24xf32>, vector<24x8xf32>, vector<16x8xf32> -> vector<16x8xf32>
    %cst_9 = arith.constant 0.000000e+00 : f32
    %11 = vector.broadcast %cst_9 : f32 to vector<16x8xf32>
    %12 = arith.maximumf %10, %11 : vector<16x8xf32>
    %c0_10 = arith.constant 0 : index
    %c0_11 = arith.constant 0 : index
    %c0_12 = arith.constant 0 : index
    %c0_13 = arith.constant 0 : index
    %13 = vector.load %arg4[%c0_10, %c0_11, %c0_12, %c0_13] : memref<1x4x16x8xf32, #tpu.memory_space<vmem>>, vector<1x1x16x8xf32>
    %14 = vector.shape_cast %13 : vector<1x1x16x8xf32> to vector<16x8xf32>
    %15 = vector.shape_cast %12 : vector<16x8xf32> to vector<1x1x16x8xf32>
    tpu.vector_store %arg4[%c0_10, %c0_11, %c0_12, %c0_13], %15 {strides = array<i32>} : memref<1x4x16x8xf32, #tpu.memory_space<vmem>>, vector<1x1x16x8xf32>,
    %16 = vector.extract_strided_slice %6 {offsets = [16, 0], sizes = [16, 24], strides = [1, 1]} : vector<64x24xf32> to vector<16x24xf32>
    %c1 = arith.constant 1 : index
    %c0_14 = arith.constant 0 : index
    %c0_15 = arith.constant 0 : index
    %17 = vector.load %arg3[%c1, %c0_14, %c0_15] : memref<4x24x8xf32, #tpu.memory_space<vmem>>, vector<1x24x8xf32>
    %18 = vector.shape_cast %17 : vector<1x24x8xf32> to vector<24x8xf32>
    %cst_16 = arith.constant dense<0.000000e+00> : vector<16x8xf32>
    %19 = tpu.matmul %16, %18, %cst_16 {dimension_numbers = #tpu.dot_dimension_numbers<[1], [0], [0], [1], [0, 0, 1, 1], [], []>} : vector<16x24xf32>, vector<24x8xf32>, vector<16x8xf32> -> vector<16x8xf32>
    %cst_17 = arith.constant 0.000000e+00 : f32
    %20 = vector.broadcast %cst_17 : f32 to vector<16x8xf32>
    %21 = arith.maximumf %19, %20 : vector<16x8xf32>
    %c0_18 = arith.constant 0 : index
    %c1_19 = arith.constant 1 : index
    %c0_20 = arith.constant 0 : index
    %c0_21 = arith.constant 0 : index
    %22 = vector.load %arg4[%c0_18, %c1_19, %c0_20, %c0_21] : memref<1x4x16x8xf32, #tpu.memory_space<vmem>>, vector<1x1x16x8xf32>
    %23 = vector.shape_cast %22 : vector<1x1x16x8xf32> to vector<16x8xf32>
    %24 = vector.shape_cast %21 : vector<16x8xf32> to vector<1x1x16x8xf32>
    tpu.vector_store %arg4[%c0_18, %c1_19, %c0_20, %c0_21], %24 {strides = array<i32>} : memref<1x4x16x8xf32, #tpu.memory_space<vmem>>, vector<1x1x16x8xf32>,
    %25 = vector.extract_strided_slice %6 {offsets = [32, 0], sizes = [16, 24], strides = [1, 1]} : vector<64x24xf32> to vector<16x24xf32>
    %c2 = arith.constant 2 : index
    %c0_22 = arith.constant 0 : index
    %c0_23 = arith.constant 0 : index
    %26 = vector.load %arg3[%c2, %c0_22, %c0_23] : memref<4x24x8xf32, #tpu.memory_space<vmem>>, vector<1x24x8xf32>
    %27 = vector.shape_cast %26 : vector<1x24x8xf32> to vector<24x8xf32>
    %cst_24 = arith.constant dense<0.000000e+00> : vector<16x8xf32>
    %28 = tpu.matmul %25, %27, %cst_24 {dimension_numbers = #tpu.dot_dimension_numbers<[1], [0], [0], [1], [0, 0, 1, 1], [], []>} : vector<16x24xf32>, vector<24x8xf32>, vector<16x8xf32> -> vector<16x8xf32>
    %cst_25 = arith.constant 0.000000e+00 : f32
    %29 = vector.broadcast %cst_25 : f32 to vector<16x8xf32>
    %30 = arith.maximumf %28, %29 : vector<16x8xf32>
    %c0_26 = arith.constant 0 : index
    %c2_27 = arith.constant 2 : index
    %c0_28 = arith.constant 0 : index
    %c0_29 = arith.constant 0 : index
    %31 = vector.load %arg4[%c0_26, %c2_27, %c0_28, %c0_29] : memref<1x4x16x8xf32, #tpu.memory_space<vmem>>, vector<1x1x16x8xf32>
    %32 = vector.shape_cast %31 : vector<1x1x16x8xf32> to vector<16x8xf32>
    %33 = vector.shape_cast %30 : vector<16x8xf32> to vector<1x1x16x8xf32>
    tpu.vector_store %arg4[%c0_26, %c2_27, %c0_28, %c0_29], %33 {strides = array<i32>} : memref<1x4x16x8xf32, #tpu.memory_space<vmem>>, vector<1x1x16x8xf32>,
    %34 = vector.extract_strided_slice %6 {offsets = [48, 0], sizes = [16, 24], strides = [1, 1]} : vector<64x24xf32> to vector<16x24xf32>
    %c3 = arith.constant 3 : index
    %c0_30 = arith.constant 0 : index
    %c0_31 = arith.constant 0 : index
    %35 = vector.load %arg3[%c3, %c0_30, %c0_31] : memref<4x24x8xf32, #tpu.memory_space<vmem>>, vector<1x24x8xf32>
    %36 = vector.shape_cast %35 : vector<1x24x8xf32> to vector<24x8xf32>
    %cst_32 = arith.constant dense<0.000000e+00> : vector<16x8xf32>
    %37 = tpu.matmul %34, %36, %cst_32 {dimension_numbers = #tpu.dot_dimension_numbers<[1], [0], [0], [1], [0, 0, 1, 1], [], []>} : vector<16x24xf32>, vector<24x8xf32>, vector<16x8xf32> -> vector<16x8xf32>
    %cst_33 = arith.constant 0.000000e+00 : f32
    %38 = vector.broadcast %cst_33 : f32 to vector<16x8xf32>
    %39 = arith.maximumf %37, %38 : vector<16x8xf32>
    %c0_34 = arith.constant 0 : index
    %c3_35 = arith.constant 3 : index
    %c0_36 = arith.constant 0 : index
    %c0_37 = arith.constant 0 : index
    %40 = vector.load %arg4[%c0_34, %c3_35, %c0_36, %c0_37] : memref<1x4x16x8xf32, #tpu.memory_space<vmem>>, vector<1x1x16x8xf32>
    %41 = vector.shape_cast %40 : vector<1x1x16x8xf32> to vector<16x8xf32>
    %42 = vector.shape_cast %39 : vector<16x8xf32> to vector<1x1x16x8xf32>
    tpu.vector_store %arg4[%c0_34, %c3_35, %c0_36, %c0_37], %42 {strides = array<i32>} : memref<1x4x16x8xf32, #tpu.memory_space<vmem>>, vector<1x1x16x8xf32>,
    return
  }
  func.func @transform_0(%arg0: i32) -> (i32, i32, i32) {
    %c0_i32 = arith.constant 0 : i32
    %c0_i32_0 = arith.constant 0 : i32
    %c0_i32_1 = arith.constant 0 : i32
    return %arg0, %c0_i32, %c0_i32_0 : i32, i32, i32
  }
  func.func @transform_1(%arg0: i32) -> (i32, i32) {
    %c0_i32 = arith.constant 0 : i32
    %c0_i32_0 = arith.constant 0 : i32
    %c0_i32_1 = arith.constant 0 : i32
    return %c0_i32, %c0_i32_0 : i32, i32
  }
  func.func @transform_2(%arg0: i32) -> (i32, i32, i32) {
    %c0_i32 = arith.constant 0 : i32
    %c0_i32_0 = arith.constant 0 : i32
    %c0_i32_1 = arith.constant 0 : i32
    %c0_i32_2 = arith.constant 0 : i32
    return %c0_i32, %c0_i32_0, %c0_i32_1 : i32, i32, i32
  }
  func.func @transform_3(%arg0: i32) -> (i32, i32, i32, i32) {
    %c0_i32 = arith.constant 0 : i32
    %c0_i32_0 = arith.constant 0 : i32
    %c0_i32_1 = arith.constant 0 : i32
    %c0_i32_2 = arith.constant 0 : i32
    return %arg0, %c0_i32, %c0_i32_0, %c0_i32_1 : i32, i32, i32, i32
  }
}

</mosaic_0001>

<llo_original>
// kernel: tpu_custom_call.1
$region0: #{tpu_custom_call.1}
  #allocation0 [shape = 'u32[]', space=smem, size = 0x4, offset = 0x4, fixed_abs, tag = 'smem constant byte address 0x4 - core index']
  #allocation1 [shape = 'u32[144,128]{1,0:T(1,128)}', space=vmem, size = 0x12000, scoped, tag = 'internal scratch']
  %s0 = inlined_call_operand.vmem [shape: f32[2,16,8], index: 0, kind: input, shape index: {}]
  %s1 = inlined_call_operand.vmem [shape: f32[64,64], index: 1, kind: input, shape index: {}]
  %s2 = inlined_call_operand.vmem [shape: f32[4,24,8], index: 2, kind: input, shape index: {}]
  %s3 = inlined_call_operand.vmem [shape: f32[2,4,16,8], index: 3, kind: output, shape index: {}]
  %s4 = sld [smem:[#allocation0]]
  $region45: #{tpu_custom_call.1} parent=0
    _
  %s6 = ssub.s32 1, %s4
  %s7 = scalar_select 0, %s6, %s4
  loop: start=0, step=1, limit=4
  $region2: #{tpu_custom_call.1} parent=0 // loop_pre_header
    _
  $region3: #{tpu_custom_call.1} parent=0 // loop_header
    %s9 = sphi 0, %s13
    %p10 = scmp.ge.s32.totalorder %s9, 4
    %s19 = sphi 0, %s21
    %s22 = sphi 0, %s19
    %s23 = sphi 0, %s22
    %s39 = sphi 0, %s23
    %s43 = sphi 0, %s43
    %s45 = sphi 0, %s43
    %s46 = sphi 0, %s45
    %s60 = sphi 0, %s46
    %s64 = sphi 0, %s64
    %s66 = sphi 0, %s64
    %s67 = sphi 0, %s66
    %s81 = sphi 0, %s67
    %s87 = sphi 0, %s89
    %s90 = sphi 0, %s87
    %s91 = sphi 0, %s90
    %s107 = sphi 0, %s91
  $region4: #{tpu_custom_call.1} parent=0 // loop_header_branch
    %12 = sbr.rel (%p10) target = $region8
  $region5: #{tpu_custom_call.1} parent=0 // loop_body
    %s14 = ssub.s32 %s9, 1
    %s15 = ssub.s32 %s9, 2
    %s16 = sadd.s32 %s9, 1
    %s17 = ssub.s32 %s9, %s16
    %p18 = scmp.eq.s32.totalorder %s17, 0
    %s20 = sadd.s32 %s19, 1
    %s21 = scalar_select %p18, %s19, %s20
    %p24 = pneg %p18
    %p25 = scmp.eq.s32.totalorder %s9, 1
    %p26 = por %p24, %p25
    %p27 = scmp.ne.s32.totalorder %s19, %s22
    %p28 = scmp.eq.s32.totalorder %s9, 0
    %p29 = por %p27, %p28
    %p30 = scmp.ne.s32.totalorder %s19, %s22
    %p31 = scmp.eq.s32.totalorder %s14, 1
    %p32 = por %p30, %p31
    %p33 = scmp.ne.s32.totalorder %s22, %s23
    %p34 = scmp.eq.s32.totalorder %s14, 0
    %p35 = por %p33, %p34
    %p36 = scmp.ne.s32.totalorder %s22, %s23
    %p37 = scmp.eq.s32.totalorder %s15, 1
    %p38 = por %p36, %p37
    %p40 = scmp.ne.s32.totalorder %s23, %s39
    %p41 = scmp.eq.s32.totalorder %s15, 0
    %p42 = por %p40, %p41
    %s44 = sadd.s32 %s43, 1
    %p47 = scmp.eq.s32.totalorder %s9, 1
    %p48 = scmp.ne.s32.totalorder %s43, %s45
    %p49 = scmp.eq.s32.totalorder %s9, 0
    %p50 = por %p48, %p49
    %p51 = scmp.ne.s32.totalorder %s43, %s45
    %p52 = scmp.eq.s32.totalorder %s14, 1
    %p53 = por %p51, %p52
    %p54 = scmp.ne.s32.totalorder %s45, %s46
    %p55 = scmp.eq.s32.totalorder %s14, 0
    %p56 = por %p54, %p55
    %p57 = scmp.ne.s32.totalorder %s45, %s46
    %p58 = scmp.eq.s32.totalorder %s15, 1
    %p59 = por %p57, %p58
    %p61 = scmp.ne.s32.totalorder %s46, %s60
    %p62 = scmp.eq.s32.totalorder %s15, 0
    %p63 = por %p61, %p62
    %s65 = sadd.s32 %s64, 1
    %p68 = scmp.eq.s32.totalorder %s9, 1
    %p69 = scmp.ne.s32.totalorder %s64, %s66
    %p70 = scmp.eq.s32.totalorder %s9, 0
    %p71 = por %p69, %p70
    %p72 = scmp.ne.s32.totalorder %s64, %s66
    %p73 = scmp.eq.s32.totalorder %s14, 1
    %p74 = por %p72, %p73
    %p75 = scmp.ne.s32.totalorder %s66, %s67
    %p76 = scmp.eq.s32.totalorder %s14, 0
    %p77 = por %p75, %p76
    %p78 = scmp.ne.s32.totalorder %s66, %s67
    %p79 = scmp.eq.s32.totalorder %s15, 1
    %p80 = por %p78, %p79
    %p82 = scmp.ne.s32.totalorder %s67, %s81
    %p83 = scmp.eq.s32.totalorder %s15, 0
    %p84 = por %p82, %p83
    %s85 = ssub.s32 %s9, %s16
    %p86 = scmp.eq.s32.totalorder %s85, 0
    %s88 = sadd.s32 %s87, 1
    %s89 = scalar_select %p86, %s87, %s88
    %p92 = pneg %p86
    %p93 = scmp.eq.s32.totalorder %s9, 1
    %p94 = por %p92, %p93
    %p95 = scmp.ne.s32.totalorder %s87, %s90
    %p96 = scmp.eq.s32.totalorder %s9, 0
    %p97 = por %p95, %p96
    %p98 = scmp.ne.s32.totalorder %s87, %s90
    %p99 = scmp.eq.s32.totalorder %s14, 1
    %p100 = por %p98, %p99
    %p101 = scmp.ne.s32.totalorder %s90, %s91
    %p102 = scmp.eq.s32.totalorder %s14, 0
    %p103 = por %p101, %p102
    %p104 = scmp.ne.s32.totalorder %s90, %s91
    %p105 = scmp.eq.s32.totalorder %s15, 1
    %p106 = por %p104, %p105
    %p108 = scmp.ne.s32.totalorder %s91, %s107
    %p109 = scmp.eq.s32.totalorder %s15, 0
    %p110 = por %p108, %p109
    %p111 = scmp.le.s32.totalorder 1, %s9
    %p112 = scmp.lt.s32.totalorder %s9, 3
    %p113 = pnand %p111, %p112
    %p114 = pneg %p113
    // Predicated region
    $region9: #{tpu_custom_call.1} parent=5 // pred_check
      _
    $region10: #{tpu_custom_call.1} parent=5 // pred_check_branch
      %116 = sbr.rel (%p113) target = $region12
    $region11: #{tpu_custom_call.1} parent=5 // pred_region
      %s117 = ssub.s32 %s9, 1
      // Predicated region
      $region13: #{tpu_custom_call.1} parent=11 // pred_check
        %p118 = pneg %p56
      $region14: #{tpu_custom_call.1} parent=11 // pred_check_branch
        %120 = sbr.rel (%p118) target = $region16
      $region15: #{tpu_custom_call.1} parent=11 // pred_region
        _
      $region16: #{tpu_custom_call.1} parent=11 // pred_fallthru
        _
      // Predicated region
      $region17: #{tpu_custom_call.1} parent=11 // pred_check
        %p121 = pneg %p77
      $region18: #{tpu_custom_call.1} parent=11 // pred_check_branch
        %123 = sbr.rel (%p121) target = $region20
      $region19: #{tpu_custom_call.1} parent=11 // pred_region
        _
      $region20: #{tpu_custom_call.1} parent=11 // pred_fallthru
        _
    $region12: #{tpu_custom_call.1} parent=5 // pred_fallthru
      _
    %p124 = scmp.lt.s32.totalorder %s9, 2
    // Predicated region
    $region21: #{tpu_custom_call.1} parent=5 // pred_check
      %p125 = pneg %p124
    $region22: #{tpu_custom_call.1} parent=5 // pred_check_branch
      %127 = sbr.rel (%p125) target = $region24
    $region23: #{tpu_custom_call.1} parent=5 // pred_region
      // Predicated region
      $region25: #{tpu_custom_call.1} parent=23 // pred_check
        %p128 = pneg %p29
      $region26: #{tpu_custom_call.1} parent=23 // pred_check_branch
        %130 = sbr.rel (%p128) target = $region28
      $region27: #{tpu_custom_call.1} parent=23 // pred_region
        %p131 = scmp.lt.s32.totalorder %s9, 1
        %s132 = scalar_select %p131, %s9, 1
        %s133 = smul.addr %s132, 2
        %s134 = smul.addr %s133, 8
        %s135 = scalar_lea.vmem %s0, %s134
      $region28: #{tpu_custom_call.1} parent=23 // pred_fallthru
        _
    $region24: #{tpu_custom_call.1} parent=5 // pred_fallthru
      _
    %p136 = scmp.le.s32.totalorder 1, %s9
    %p137 = scmp.lt.s32.totalorder %s9, 3
    %p138 = pnand %p136, %p137
    %p139 = pneg %p138
    // Predicated region
    $region29: #{tpu_custom_call.1} parent=5 // pred_check
      _
    $region30: #{tpu_custom_call.1} parent=5 // pred_check_branch
      %141 = sbr.rel (%p138) target = $region32
    $region31: #{tpu_custom_call.1} parent=5 // pred_region
      %s142 = ssub.s32 %s9, 1
      %p143 = scmp.lt.s32.totalorder %s14, 1
      %s144 = scalar_select %p143, %s14, 1
      %s145 = smul.addr %s144, 2
      %s146 = smul.addr %s145, 8
      %s147 = scalar_lea.vmem %s0, %s146
      %p148 = pneg %p35
      %p149 = pneg %p32
      %p150 = pneg %p56
      %p151 = pneg %p53
      %p152 = pneg %p77
      %p153 = pneg %p74
      %p154 = pneg %p103
      %p155 = pneg %p100
      %p156 = scmp.lt.s32.totalorder %s14, 1
      %s157 = scalar_select %p156, %s14, 1
      %s158 = smul.addr %s157, 8
      %s159 = smul.addr %s158, 8
      %s160 = scalar_lea.vmem %s3, %s159
      %p161 = scmp.lt.s32.totalorder %s14, 1
      %s162 = scalar_select %p161, %s14, 1
      %s163 = smul.addr %s162, 2
      %s164 = smul.addr %s163, 8
      %s165 = scalar_lea.vmem %s0, %s164
      %p166 = scmp.lt.s32.totalorder %s14, 1
      %s167 = scalar_select %p166, %s14, 1
      %s168 = smul.addr %s167, 8
      %s169 = smul.addr %s168, 8
      %s170 = scalar_lea.vmem %s3, %s169
      %v171 = vld [vmem:[%s165] sm:$0xff]
      %v172 = vld [vmem:[%s165 + $0x8] sm:$0xff]
      %v173 = vld [vmem:[%s1] sm:$0xff]
      %v174 = vld [vmem:[%s1 + $0x8] sm:$0xff]
      %v175 = vld [vmem:[%s1 + $0x10] sm:$0xff]
      %v176 = vld [vmem:[%s1 + $0x18] sm:$0xff]
      %v177 = vld [vmem:[%s1 + $0x20] sm:$0xff]
      %v178 = vld [vmem:[%s1 + $0x28] sm:$0xff]
      %v179 = vld [vmem:[%s1 + $0x30] sm:$0xff]
      %v180 = vld [vmem:[%s1 + $0x38] sm:$0xff]
      %vm181 = vcmask 523264
      %v183 = vsel %vm181, %v173, 0
      %v186 = vsel %vm181, %v174, 0
      %v189 = vsel %vm181, %v175, 0
      %v192 = vsel %vm181, %v176, 0
      %v195 = vsel %vm181, %v177, 0
      %v198 = vsel %vm181, %v178, 0
      %v201 = vsel %vm181, %v179, 0
      %v204 = vsel %vm181, %v180, 0
      %206 = vmatprep.subr.mxu0 0.0
      %207 = vmatpush1.msra.mxu0 %v171
      %208 = vmatprep.subr.mxu0 0.0
      %209 = vmatpush1.msra.mxu0 %v172
      %210 = vmatprep.subr.mxu0 0.0
      %211 = vmatpush1.msra.mxu0 %v171
      %212 = vmatprep.subr.mxu0 0.0
      %213 = vmatpush1.msra.mxu0 %v172
      %214 = vmatprep.subr.mxu0 0.0
      %215 = vmatpush1.msra.mxu0 %v171
      %216 = vmatprep.subr.mxu0 0.0
      %217 = vmatpush1.msra.mxu0 %v172
      %218 = vmatprep.subr.mxu0 0.0
      %219 = vmatpush1.msra.mxu0 %v171
      %220 = vmatprep.subr.mxu0 0.0
      %221 = vmatpush1.msra.mxu0 %v172
      %222 = vmatprep.subr.mxu0 0.0
      %223 = vmatpush1.msra.mxu0 0.0
      %224 = vmatprep.subr.mxu0 0.0
      %225 = vmatpush1.msra.mxu0 0.0
      %226 = vmatprep.subr.mxu0 0.0
      %227 = vmatpush1.msra.mxu0 0.0
      %228 = vmatprep.subr.mxu0 0.0
      %229 = vmatpush1.msra.mxu0 0.0
      %230 = vmatprep.subr.mxu0 0.0
      %231 = vmatpush1.msra.mxu0 0.0
      %232 = vmatprep.subr.mxu0 0.0
      %233 = vmatpush1.msra.mxu0 0.0
      %234 = vmatprep.subr.mxu0 0.0
      %235 = vmatpush1.msra.mxu0 0.0
      %236 = vmatprep.subr.mxu0 0.0
      %237 = vmatpush1.msra.mxu0 0.0
      %238 = vmatprep.subr.mxu0 0.0
      %239 = vmatpush1.msra.mxu0 0.0
      %240 = vmatprep.subr.mxu0 0.0
      %241 = vmatpush1.msra.mxu0 0.0
      %242 = vmatprep.subr.mxu0 0.0
      %243 = vmatpush1.msra.mxu0 0.0
      %244 = vmatprep.subr.mxu0 0.0
      %245 = vmatpush1.msra.mxu0 0.0
      %246 = vmatprep.subr.mxu0 0.0
      %247 = vmatpush1.msra.mxu0 0.0
      %248 = vmatprep.subr.mxu0 0.0
      %249 = vmatpush1.msra.mxu0 0.0
      %250 = vmatprep.subr.mxu0 0.0
      %251 = vmatpush1.msra.mxu0 0.0
      %252 = vmatprep.subr.mxu0 0.0
      %253 = vmatpush1.msra.mxu0 0.0
      %254 = vmatprep.subr.mxu0 0.0
      %255 = vmatpush1.msra.mxu0 0.0
      %256 = vmatprep.subr.mxu0 0.0
      %257 = vmatpush1.msra.mxu0 0.0
      %258 = vmatprep.subr.mxu0 0.0
      %259 = vmatpush1.msra.mxu0 0.0
      %260 = vmatprep.subr.mxu0 0.0
      %261 = vmatpush1.msra.mxu0 0.0
      %262 = vmatprep.subr.mxu0 0.0
      %263 = vmatpush1.msra.mxu0 0.0
      %264 = vmatprep.subr.mxu0 0.0
      %265 = vmatpush1.msra.mxu0 0.0
      %266 = vmatprep.subr.mxu0 0.0
      %267 = vmatpush1.msra.mxu0 0.0
      %268 = vmatprep.subr.mxu0 0.0
      %269 = vmatpush1.msra.mxu0 0.0
      %270 = vmatprep.mubr.f32.mxu0 0.0
      %271 = vmatmul.mubr.f32.gmra.mrb[0].mxu0 %v183
      %v272 = vpop.f32.mrb[0].mxu0
      %v273 = vadd.f32 0.0, %v272
      %v274 = vpop.f32.mrb[0].mxu0
      %275 = vmatprep.mubr.f32.mxu0 0.0
      %276 = vmatmul.mubr.f32.gmra.mrb[0].mxu0 %v186
      %v277 = vpop.f32.mrb[0].mxu0
      %v278 = vadd.f32 0.0, %v277
      %v279 = vpop.f32.mrb[0].mxu0
      %280 = vmatprep.mubr.f32.mxu0 0.0
      %281 = vmatmul.mubr.f32.gmra.mrb[0].mxu0 %v189
      %v282 = vpop.f32.mrb[0].mxu0
      %v283 = vadd.f32 0.0, %v282
      %v284 = vpop.f32.mrb[0].mxu0
      %285 = vmatprep.mubr.f32.mxu0 0.0
      %286 = vmatmul.mubr.f32.gmra.mrb[0].mxu0 %v192
      %v287 = vpop.f32.mrb[0].mxu0
      %v288 = vadd.f32 0.0, %v287
      %v289 = vpop.f32.mrb[0].mxu0
      %290 = vmatprep.mubr.f32.mxu0 0.0
      %291 = vmatmul.mubr.f32.gmra.mrb[0].mxu0 %v195
      %v292 = vpop.f32.mrb[0].mxu0
      %v293 = vadd.f32 0.0, %v292
      %v294 = vpop.f32.mrb[0].mxu0
      %295 = vmatprep.mubr.f32.mxu0 0.0
      %296 = vmatmul.mubr.f32.gmra.mrb[0].mxu0 %v198
      %v297 = vpop.f32.mrb[0].mxu0
      %v298 = vadd.f32 0.0, %v297
      %v299 = vpop.f32.mrb[0].mxu0
      %300 = vmatprep.mubr.f32.mxu0 0.0
      %301 = vmatmul.mubr.f32.gmra.mrb[0].mxu0 %v201
      %v302 = vpop.f32.mrb[0].mxu0
      %v303 = vadd.f32 0.0, %v302
      %v304 = vpop.f32.mrb[0].mxu0
      %305 = vmatprep.mubr.f32.mxu0 0.0
      %306 = vmatmul.mubr.f32.gmra.mrb[0].mxu0 %v204
      %v307 = vpop.f32.mrb[0].mxu0
      %v308 = vadd.f32 0.0, %v307
      %v309 = vpop.f32.mrb[0].mxu0
      %310 = vdwg.mxu0
      %311 = vmatprep.subr.mxu0 0.0
      %312 = vmatpush1.msra.mxu0 %v273
      %313 = vmatprep.subr.mxu0 0.0
      %314 = vmatpush1.msra.mxu0 %v278
      %315 = vmatprep.subr.mxu0 0.0
      %316 = vmatpush1.msra.mxu0 %v283
      %317 = vmatprep.subr.mxu0 0.0
      %318 = vmatpush1.msra.mxu0 %v288
      %319 = vmatprep.subr.mxu0 0.0
      %320 = vmatpush1.msra.mxu0 %v293
      %321 = vmatprep.subr.mxu0 0.0
      %322 = vmatpush1.msra.mxu0 %v298
      %323 = vmatprep.subr.mxu0 0.0
      %324 = vmatpush1.msra.mxu0 %v303
      %325 = vmatprep.subr.mxu0 0.0
      %326 = vmatpush1.msra.mxu0 %v308
      %327 = vmatprep.subr.mxu0 0.0
      %328 = vmatpush1.msra.mxu0 0.0
      %329 = vmatprep.subr.mxu0 0.0
      %330 = vmatpush1.msra.mxu0 0.0
      %331 = vmatprep.subr.mxu0 0.0
      %332 = vmatpush1.msra.mxu0 0.0
      %333 = vmatprep.subr.mxu0 0.0
      %334 = vmatpush1.msra.mxu0 0.0
      %335 = vmatprep.subr.mxu0 0.0
      %336 = vmatpush1.msra.mxu0 0.0
      %337 = vmatprep.subr.mxu0 0.0
      %338 = vmatpush1.msra.mxu0 0.0
      %339 = vmatprep.subr.mxu0 0.0
      %340 = vmatpush1.msra.mxu0 0.0
      %341 = vmatprep.subr.mxu0 0.0
      %342 = vmatpush1.msra.mxu0 0.0
      %343 = vmatprep.subr.mxu0 0.0
      %344 = vmatpush1.msra.mxu0 0.0
      %345 = vmatprep.subr.mxu0 0.0
      %346 = vmatpush1.msra.mxu0 0.0
      %347 = vmatprep.subr.mxu0 0.0
      %348 = vmatpush1.msra.mxu0 0.0
      %349 = vmatprep.subr.mxu0 0.0
      %350 = vmatpush1.msra.mxu0 0.0
      %351 = vmatprep.subr.mxu0 0.0
      %352 = vmatpush1.msra.mxu0 0.0
      %353 = vmatprep.subr.mxu0 0.0
      %354 = vmatpush1.msra.mxu0 0.0
      %355 = vmatprep.subr.mxu0 0.0
      %356 = vmatpush1.msra.mxu0 0.0
      %357 = vmatprep.subr.mxu0 0.0
      %358 = vmatpush1.msra.mxu0 0.0
      %359 = vmatprep.subr.mxu0 0.0
      %360 = vmatpush1.msra.mxu0 0.0
      %361 = vmatprep.subr.mxu0 0.0
      %362 = vmatpush1.msra.mxu0 0.0
      %363 = vmatprep.subr.mxu0 0.0
      %364 = vmatpush1.msra.mxu0 0.0
      %365 = vmatprep.subr.mxu0 0.0
      %366 = vmatpush1.msra.mxu0 0.0
      %367 = vmatprep.subr.mxu0 0.0
      %368 = vmatpush1.msra.mxu0 0.0
      %369 = vmatprep.subr.mxu0 0.0
      %370 = vmatpush1.msra.mxu0 0.0
      %371 = vmatprep.subr.mxu0 0.0
      %372 = vmatpush1.msra.mxu0 0.0
      %373 = vmatprep.subr.mxu0 0.0
      %374 = vmatpush1.msra.mxu0 0.0
      %375 = vmatprep.mubr.f32.mxu0 0.0
      %376 = vmatmul.mubr.f32.gmra.mrb[0].mxu0 %v183
      %v377 = vpop.f32.mrb[0].mxu0
      %v378 = vadd.f32 0.0, %v377
      %v379 = vpop.f32.mrb[0].mxu0
      %380 = vmatprep.mubr.f32.mxu0 0.0
      %381 = vmatmul.mubr.f32.gmra.mrb[0].mxu0 %v186
      %v382 = vpop.f32.mrb[0].mxu0
      %v383 = vadd.f32 0.0, %v382
      %v384 = vpop.f32.mrb[0].mxu0
      %385 = vmatprep.mubr.f32.mxu0 0.0
      %386 = vmatmul.mubr.f32.gmra.mrb[0].mxu0 %v189
      %v387 = vpop.f32.mrb[0].mxu0
      %v388 = vadd.f32 0.0, %v387
      %v389 = vpop.f32.mrb[0].mxu0
      %390 = vmatprep.mubr.f32.mxu0 0.0
      %391 = vmatmul.mubr.f32.gmra.mrb[0].mxu0 %v192
      %v392 = vpop.f32.mrb[0].mxu0
      %v393 = vadd.f32 0.0, %v392
      %v394 = vpop.f32.mrb[0].mxu0
      %395 = vmatprep.mubr.f32.mxu0 0.0
      %396 = vmatmul.mubr.f32.gmra.mrb[0].mxu0 %v195
      %v397 = vpop.f32.mrb[0].mxu0
      %v398 = vadd.f32 0.0, %v397
      %v399 = vpop.f32.mrb[0].mxu0
      %400 = vmatprep.mubr.f32.mxu0 0.0
      %401 = vmatmul.mubr.f32.gmra.mrb[0].mxu0 %v198
      %v402 = vpop.f32.mrb[0].mxu0
      %v403 = vadd.f32 0.0, %v402
      %v404 = vpop.f32.mrb[0].mxu0
      %405 = vmatprep.mubr.f32.mxu0 0.0
      %406 = vmatmul.mubr.f32.gmra.mrb[0].mxu0 %v201
      %v407 = vpop.f32.mrb[0].mxu0
      %v408 = vadd.f32 0.0, %v407
      %v409 = vpop.f32.mrb[0].mxu0
      %410 = vmatprep.mubr.f32.mxu0 0.0
      %411 = vmatmul.mubr.f32.gmra.mrb[0].mxu0 %v204
      %v412 = vpop.f32.mrb[0].mxu0
      %v413 = vadd.f32 0.0, %v412
      %v414 = vpop.f32.mrb[0].mxu0
      %415 = vdwg.mxu0
      %424 = vrot.lane.b32.xlu0 %v273, 8
      %v425 = vpop.permute.xlu0 %424
      %426 = vrot.lane.b32.xlu0 %v278, 8
      %v427 = vpop.permute.xlu0 %426
      %428 = vrot.lane.b32.xlu0 %v283, 8
      %v429 = vpop.permute.xlu0 %428
      %430 = vrot.lane.b32.xlu0 %v288, 8
      %v431 = vpop.permute.xlu0 %430
      %432 = vrot.lane.b32.xlu0 %v293, 8
      %v433 = vpop.permute.xlu0 %432
      %434 = vrot.lane.b32.xlu0 %v298, 8
      %v435 = vpop.permute.xlu0 %434
      %436 = vrot.lane.b32.xlu0 %v303, 8
      %v437 = vpop.permute.xlu0 %436
      %438 = vrot.lane.b32.xlu0 %v308, 8
      %v439 = vpop.permute.xlu0 %438
      %456 = vrot.lane.b32.xlu0 %v378, 16
      %v457 = vpop.permute.xlu0 %456
      %458 = vrot.lane.b32.xlu0 %v383, 16
      %v459 = vpop.permute.xlu0 %458
      %460 = vrot.lane.b32.xlu0 %v388, 16
      %v461 = vpop.permute.xlu0 %460
      %462 = vrot.lane.b32.xlu0 %v393, 16
      %v463 = vpop.permute.xlu0 %462
      %464 = vrot.lane.b32.xlu0 %v398, 16
      %v465 = vpop.permute.xlu0 %464
      %466 = vrot.lane.b32.xlu0 %v403, 16
      %v467 = vpop.permute.xlu0 %466
      %468 = vrot.lane.b32.xlu0 %v408, 16
      %v469 = vpop.permute.xlu0 %468
      %470 = vrot.lane.b32.xlu0 %v413, 16
      %v471 = vpop.permute.xlu0 %470
      %vm480 = vcmask 64512
      %v481 = vsel %vm480, %v171, %v425
      %v482 = vsel %vm480, %v172, %v427
      %v483 = vsel %vm480, %v171, %v429
      %v484 = vsel %vm480, %v172, %v431
      %v485 = vsel %vm480, %v171, %v433
      %v486 = vsel %vm480, %v172, %v435
      %v487 = vsel %vm480, %v171, %v437
      %v488 = vsel %vm480, %v172, %v439
      %vm489 = vcmask 130048
      %v490 = vsel %vm489, %v481, %v457
      %v491 = vsel %vm489, %v482, %v459
      %v492 = vsel %vm489, %v483, %v461
      %v493 = vsel %vm489, %v484, %v463
      %v494 = vsel %vm489, %v485, %v465
      %v495 = vsel %vm489, %v486, %v467
      %v496 = vsel %vm489, %v487, %v469
      %v497 = vsel %vm489, %v488, %v471
      %v498 = vld [vmem:[%s2] sm:$0xff]
      %v499 = vld [vmem:[%s2 + $0x8] sm:$0xff]
      %v500 = vld [vmem:[%s2 + $0x10] sm:$0xff]
      %vm501 = vcmask 195584
      %v503 = vsel %vm501, %v490, 0
      %v506 = vsel %vm501, %v491, 0
      %508 = vmatprep.subr.mxu0 0.0
      %509 = vmatpush1.msra.mxu0 %v498
      %510 = vmatprep.subr.mxu0 0.0
      %511 = vmatpush1.msra.mxu0 %v499
      %512 = vmatprep.subr.mxu0 0.0
      %513 = vmatpush1.msra.mxu0 %v500
      %514 = vmatprep.subr.mxu0 0.0
      %515 = vmatpush1.msra.mxu0 0.0
      %516 = vmatprep.subr.mxu0 0.0
      %517 = vmatpush1.msra.mxu0 0.0
      %518 = vmatprep.subr.mxu0 0.0
      %519 = vmatpush1.msra.mxu0 0.0
      %520 = vmatprep.subr.mxu0 0.0
      %521 = vmatpush1.msra.mxu0 0.0
      %522 = vmatprep.subr.mxu0 0.0
      %523 = vmatpush1.msra.mxu0 0.0
      %524 = vmatprep.subr.mxu0 0.0
      %525 = vmatpush1.msra.mxu0 0.0
      %526 = vmatprep.subr.mxu0 0.0
      %527 = vmatpush1.msra.mxu0 0.0
      %528 = vmatprep.subr.mxu0 0.0
      %529 = vmatpush1.msra.mxu0 0.0
      %530 = vmatprep.subr.mxu0 0.0
      %531 = vmatpush1.msra.mxu0 0.0
      %532 = vmatprep.subr.mxu0 0.0
      %533 = vmatpush1.msra.mxu0 0.0
      %534 = vmatprep.subr.mxu0 0.0
      %535 = vmatpush1.msra.mxu0 0.0
      %536 = vmatprep.subr.mxu0 0.0
      %537 = vmatpush1.msra.mxu0 0.0
      %538 = vmatprep.subr.mxu0 0.0
      %539 = vmatpush1.msra.mxu0 0.0
      %540 = vmatprep.subr.mxu0 0.0
      %541 = vmatpush1.msra.mxu0 0.0
      %542 = vmatprep.subr.mxu0 0.0
      %543 = vmatpush1.msra.mxu0 0.0
      %544 = vmatprep.subr.mxu0 0.0
      %545 = vmatpush1.msra.mxu0 0.0
      %546 = vmatprep.subr.mxu0 0.0
      %547 = vmatpush1.msra.mxu0 0.0
      %548 = vmatprep.subr.mxu0 0.0
      %549 = vmatpush1.msra.mxu0 0.0
      %550 = vmatprep.subr.mxu0 0.0
      %551 = vmatpush1.msra.mxu0 0.0
      %552 = vmatprep.subr.mxu0 0.0
      %553 = vmatpush1.msra.mxu0 0.0
      %554 = vmatprep.subr.mxu0 0.0
      %555 = vmatpush1.msra.mxu0 0.0
      %556 = vmatprep.subr.mxu0 0.0
      %557 = vmatpush1.msra.mxu0 0.0
      %558 = vmatprep.subr.mxu0 0.0
      %559 = vmatpush1.msra.mxu0 0.0
      %560 = vmatprep.subr.mxu0 0.0
      %561 = vmatpush1.msra.mxu0 0.0
      %562 = vmatprep.subr.mxu0 0.0
      %563 = vmatpush1.msra.mxu0 0.0
      %564 = vmatprep.subr.mxu0 0.0
      %565 = vmatpush1.msra.mxu0 0.0
      %566 = vmatprep.subr.mxu0 0.0
      %567 = vmatpush1.msra.mxu0 0.0
      %568 = vmatprep.subr.mxu0 0.0
      %569 = vmatpush1.msra.mxu0 0.0
      %570 = vmatprep.subr.mxu0 0.0
      %571 = vmatpush1.msra.mxu0 0.0
      %572 = vmatprep.mubr.f32.mxu0 0.0
      %573 = vmatmul.mubr.f32.gmra.mrb[0].mxu0 %v503
      %v574 = vpop.f32.mrb[0].mxu0
      %v575 = vadd.f32 0.0, %v574
      %v576 = vpop.f32.mrb[0].mxu0
      %577 = vmatprep.mubr.f32.mxu0 0.0
      %578 = vmatmul.mubr.f32.gmra.mrb[0].mxu0 %v506
      %v579 = vpop.f32.mrb[0].mxu0
      %v580 = vadd.f32 0.0, %v579
      %v581 = vpop.f32.mrb[0].mxu0
      %582 = vdwg.mxu0
      %v583 = vmax.f32 %v575, 0.0
      %v584 = vmax.f32 %v580, 0.0
      %585 = vst.msk [vmem:[%s170] sm:$0xff] %vm480, %v583
      %586 = vst.msk [vmem:[%s170 + $0x8] sm:$0xff] %vm480, %v584
      %s587 = scalar_lea.vmem %s2, 24
      %v588 = vld [vmem:[%s587] sm:$0xff]
      %v589 = vld [vmem:[%s587 + $0x8] sm:$0xff]
      %v590 = vld [vmem:[%s587 + $0x10] sm:$0xff]
      %v592 = vsel %vm501, %v492, 0
      %v595 = vsel %vm501, %v493, 0
      %597 = vmatprep.subr.mxu0 0.0
      %598 = vmatpush1.msra.mxu0 %v588
      %599 = vmatprep.subr.mxu0 0.0
      %600 = vmatpush1.msra.mxu0 %v589
      %601 = vmatprep.subr.mxu0 0.0
      %602 = vmatpush1.msra.mxu0 %v590
      %603 = vmatprep.subr.mxu0 0.0
      %604 = vmatpush1.msra.mxu0 0.0
      %605 = vmatprep.subr.mxu0 0.0
      %606 = vmatpush1.msra.mxu0 0.0
      %607 = vmatprep.subr.mxu0 0.0
      %608 = vmatpush1.msra.mxu0 0.0
      %609 = vmatprep.subr.mxu0 0.0
      %610 = vmatpush1.msra.mxu0 0.0
      %611 = vmatprep.subr.mxu0 0.0
      %612 = vmatpush1.msra.mxu0 0.0
      %613 = vmatprep.subr.mxu0 0.0
      %614 = vmatpush1.msra.mxu0 0.0
      %615 = vmatprep.subr.mxu0 0.0
      %616 = vmatpush1.msra.mxu0 0.0
      %617 = vmatprep.subr.mxu0 0.0
      %618 = vmatpush1.msra.mxu0 0.0
      %619 = vmatprep.subr.mxu0 0.0
      %620 = vmatpush1.msra.mxu0 0.0
      %621 = vmatprep.subr.mxu0 0.0
      %622 = vmatpush1.msra.mxu0 0.0
      %623 = vmatprep.subr.mxu0 0.0
      %624 = vmatpush1.msra.mxu0 0.0
      %625 = vmatprep.subr.mxu0 0.0
      %626 = vmatpush1.msra.mxu0 0.0
      %627 = vmatprep.subr.mxu0 0.0
      %628 = vmatpush1.msra.mxu0 0.0
      %629 = vmatprep.subr.mxu0 0.0
      %630 = vmatpush1.msra.mxu0 0.0
      %631 = vmatprep.subr.mxu0 0.0
      %632 = vmatpush1.msra.mxu0 0.0
      %633 = vmatprep.subr.mxu0 0.0
      %634 = vmatpush1.msra.mxu0 0.0
      %635 = vmatprep.subr.mxu0 0.0
      %636 = vmatpush1.msra.mxu0 0.0
      %637 = vmatprep.subr.mxu0 0.0
      %638 = vmatpush1.msra.mxu0 0.0
      %639 = vmatprep.subr.mxu0 0.0
      %640 = vmatpush1.msra.mxu0 0.0
      %641 = vmatprep.subr.mxu0 0.0
      %642 = vmatpush1.msra.mxu0 0.0
      %643 = vmatprep.subr.mxu0 0.0
      %644 = vmatpush1.msra.mxu0 0.0
      %645 = vmatprep.subr.mxu0 0.0
      %646 = vmatpush1.msra.mxu0 0.0
      %647 = vmatprep.subr.mxu0 0.0
      %648 = vmatpush1.msra.mxu0 0.0
      %649 = vmatprep.subr.mxu0 0.0
      %650 = vmatpush1.msra.mxu0 0.0
      %651 = vmatprep.subr.mxu0 0.0
      %652 = vmatpush1.msra.mxu0 0.0
      %653 = vmatprep.subr.mxu0 0.0
      %654 = vmatpush1.msra.mxu0 0.0
      %655 = vmatprep.subr.mxu0 0.0
      %656 = vmatpush1.msra.mxu0 0.0
      %657 = vmatprep.subr.mxu0 0.0
      %658 = vmatpush1.msra.mxu0 0.0
      %659 = vmatprep.subr.mxu0 0.0
      %660 = vmatpush1.msra.mxu0 0.0
      %661 = vmatprep.mubr.f32.mxu0 0.0
      %662 = vmatmul.mubr.f32.gmra.mrb[0].mxu0 %v592
      %v663 = vpop.f32.mrb[0].mxu0
      %v664 = vadd.f32 0.0, %v663
      %v665 = vpop.f32.mrb[0].mxu0
      %666 = vmatprep.mubr.f32.mxu0 0.0
      %667 = vmatmul.mubr.f32.gmra.mrb[0].mxu0 %v595
      %v668 = vpop.f32.mrb[0].mxu0
      %v669 = vadd.f32 0.0, %v668
      %v670 = vpop.f32.mrb[0].mxu0
      %671 = vdwg.mxu0
      %v672 = vmax.f32 %v664, 0.0
      %v673 = vmax.f32 %v669, 0.0
      %s674 = scalar_lea.vmem %s170, 16
      %675 = vst.msk [vmem:[%s674] sm:$0xff] %vm480, %v672
      %676 = vst.msk [vmem:[%s674 + $0x8] sm:$0xff] %vm480, %v673
      %s677 = scalar_lea.vmem %s2, 48
      %v678 = vld [vmem:[%s677] sm:$0xff]
      %v679 = vld [vmem:[%s677 + $0x8] sm:$0xff]
      %v680 = vld [vmem:[%s677 + $0x10] sm:$0xff]
      %v682 = vsel %vm501, %v494, 0
      %v685 = vsel %vm501, %v495, 0
      %687 = vmatprep.subr.mxu0 0.0
      %688 = vmatpush1.msra.mxu0 %v678
      %689 = vmatprep.subr.mxu0 0.0
      %690 = vmatpush1.msra.mxu0 %v679
      %691 = vmatprep.subr.mxu0 0.0
      %692 = vmatpush1.msra.mxu0 %v680
      %693 = vmatprep.subr.mxu0 0.0
      %694 = vmatpush1.msra.mxu0 0.0
      %695 = vmatprep.subr.mxu0 0.0
      %696 = vmatpush1.msra.mxu0 0.0
      %697 = vmatprep.subr.mxu0 0.0
      %698 = vmatpush1.msra.mxu0 0.0
      %699 = vmatprep.subr.mxu0 0.0
      %700 = vmatpush1.msra.mxu0 0.0
      %701 = vmatprep.subr.mxu0 0.0
      %702 = vmatpush1.msra.mxu0 0.0
      %703 = vmatprep.subr.mxu0 0.0
      %704 = vmatpush1.msra.mxu0 0.0
      %705 = vmatprep.subr.mxu0 0.0
      %706 = vmatpush1.msra.mxu0 0.0
      %707 = vmatprep.subr.mxu0 0.0
      %708 = vmatpush1.msra.mxu0 0.0
      %709 = vmatprep.subr.mxu0 0.0
      %710 = vmatpush1.msra.mxu0 0.0
      %711 = vmatprep.subr.mxu0 0.0
      %712 = vmatpush1.msra.mxu0 0.0
      %713 = vmatprep.subr.mxu0 0.0
      %714 = vmatpush1.msra.mxu0 0.0
      %715 = vmatprep.subr.mxu0 0.0
      %716 = vmatpush1.msra.mxu0 0.0
      %717 = vmatprep.subr.mxu0 0.0
      %718 = vmatpush1.msra.mxu0 0.0
      %719 = vmatprep.subr.mxu0 0.0
      %720 = vmatpush1.msra.mxu0 0.0
      %721 = vmatprep.subr.mxu0 0.0
      %722 = vmatpush1.msra.mxu0 0.0
      %723 = vmatprep.subr.mxu0 0.0
      %724 = vmatpush1.msra.mxu0 0.0
      %725 = vmatprep.subr.mxu0 0.0
      %726 = vmatpush1.msra.mxu0 0.0
      %727 = vmatprep.subr.mxu0 0.0
      %728 = vmatpush1.msra.mxu0 0.0
      %729 = vmatprep.subr.mxu0 0.0
      %730 = vmatpush1.msra.mxu0 0.0
      %731 = vmatprep.subr.mxu0 0.0
      %732 = vmatpush1.msra.mxu0 0.0
      %733 = vmatprep.subr.mxu0 0.0
      %734 = vmatpush1.msra.mxu0 0.0
      %735 = vmatprep.subr.mxu0 0.0
      %736 = vmatpush1.msra.mxu0 0.0
      %737 = vmatprep.subr.mxu0 0.0
      %738 = vmatpush1.msra.mxu0 0.0
      %739 = vmatprep.subr.mxu0 0.0
      %740 = vmatpush1.msra.mxu0 0.0
      %741 = vmatprep.subr.mxu0 0.0
      %742 = vmatpush1.msra.mxu0 0.0
      %743 = vmatprep.subr.mxu0 0.0
      %744 = vmatpush1.msra.mxu0 0.0
      %745 = vmatprep.subr.mxu0 0.0
      %746 = vmatpush1.msra.mxu0 0.0
      %747 = vmatprep.subr.mxu0 0.0
      %748 = vmatpush1.msra.mxu0 0.0
      %749 = vmatprep.subr.mxu0 0.0
      %750 = vmatpush1.msra.mxu0 0.0
      %751 = vmatprep.mubr.f32.mxu0 0.0
      %752 = vmatmul.mubr.f32.gmra.mrb[0].mxu0 %v682
      %v753 = vpop.f32.mrb[0].mxu0
      %v754 = vadd.f32 0.0, %v753
      %v755 = vpop.f32.mrb[0].mxu0
      %756 = vmatprep.mubr.f32.mxu0 0.0
      %757 = vmatmul.mubr.f32.gmra.mrb[0].mxu0 %v685
      %v758 = vpop.f32.mrb[0].mxu0
      %v759 = vadd.f32 0.0, %v758
      %v760 = vpop.f32.mrb[0].mxu0
      %761 = vdwg.mxu0
      %v762 = vmax.f32 %v754, 0.0
      %v763 = vmax.f32 %v759, 0.0
      %s764 = scalar_lea.vmem %s170, 32
      %765 = vst.msk [vmem:[%s764] sm:$0xff] %vm480, %v762
      %766 = vst.msk [vmem:[%s764 + $0x8] sm:$0xff] %vm480, %v763
      %s767 = scalar_lea.vmem %s2, 72
      %v768 = vld [vmem:[%s767] sm:$0xff]
      %v769 = vld [vmem:[%s767 + $0x8] sm:$0xff]
      %v770 = vld [vmem:[%s767 + $0x10] sm:$0xff]
      %v772 = vsel %vm501, %v496, 0
      %v775 = vsel %vm501, %v497, 0
      %777 = vmatprep.subr.mxu0 0.0
      %778 = vmatpush1.msra.mxu0 %v768
      %779 = vmatprep.subr.mxu0 0.0
      %780 = vmatpush1.msra.mxu0 %v769
      %781 = vmatprep.subr.mxu0 0.0
      %782 = vmatpush1.msra.mxu0 %v770
      %783 = vmatprep.subr.mxu0 0.0
      %784 = vmatpush1.msra.mxu0 0.0
      %785 = vmatprep.subr.mxu0 0.0
      %786 = vmatpush1.msra.mxu0 0.0
      %787 = vmatprep.subr.mxu0 0.0
      %788 = vmatpush1.msra.mxu0 0.0
      %789 = vmatprep.subr.mxu0 0.0
      %790 = vmatpush1.msra.mxu0 0.0
      %791 = vmatprep.subr.mxu0 0.0
      %792 = vmatpush1.msra.mxu0 0.0
      %793 = vmatprep.subr.mxu0 0.0
      %794 = vmatpush1.msra.mxu0 0.0
      %795 = vmatprep.subr.mxu0 0.0
      %796 = vmatpush1.msra.mxu0 0.0
      %797 = vmatprep.subr.mxu0 0.0
      %798 = vmatpush1.msra.mxu0 0.0
      %799 = vmatprep.subr.mxu0 0.0
      %800 = vmatpush1.msra.mxu0 0.0
      %801 = vmatprep.subr.mxu0 0.0
      %802 = vmatpush1.msra.mxu0 0.0
      %803 = vmatprep.subr.mxu0 0.0
      %804 = vmatpush1.msra.mxu0 0.0
      %805 = vmatprep.subr.mxu0 0.0
      %806 = vmatpush1.msra.mxu0 0.0
      %807 = vmatprep.subr.mxu0 0.0
      %808 = vmatpush1.msra.mxu0 0.0
      %809 = vmatprep.subr.mxu0 0.0
      %810 = vmatpush1.msra.mxu0 0.0
      %811 = vmatprep.subr.mxu0 0.0
      %812 = vmatpush1.msra.mxu0 0.0
      %813 = vmatprep.subr.mxu0 0.0
      %814 = vmatpush1.msra.mxu0 0.0
      %815 = vmatprep.subr.mxu0 0.0
      %816 = vmatpush1.msra.mxu0 0.0
      %817 = vmatprep.subr.mxu0 0.0
      %818 = vmatpush1.msra.mxu0 0.0
      %819 = vmatprep.subr.mxu0 0.0
      %820 = vmatpush1.msra.mxu0 0.0
      %821 = vmatprep.subr.mxu0 0.0
      %822 = vmatpush1.msra.mxu0 0.0
      %823 = vmatprep.subr.mxu0 0.0
      %824 = vmatpush1.msra.mxu0 0.0
      %825 = vmatprep.subr.mxu0 0.0
      %826 = vmatpush1.msra.mxu0 0.0
      %827 = vmatprep.subr.mxu0 0.0
      %828 = vmatpush1.msra.mxu0 0.0
      %829 = vmatprep.subr.mxu0 0.0
      %830 = vmatpush1.msra.mxu0 0.0
      %831 = vmatprep.subr.mxu0 0.0
      %832 = vmatpush1.msra.mxu0 0.0
      %833 = vmatprep.subr.mxu0 0.0
      %834 = vmatpush1.msra.mxu0 0.0
      %835 = vmatprep.subr.mxu0 0.0
      %836 = vmatpush1.msra.mxu0 0.0
      %837 = vmatprep.subr.mxu0 0.0
      %838 = vmatpush1.msra.mxu0 0.0
      %839 = vmatprep.subr.mxu0 0.0
      %840 = vmatpush1.msra.mxu0 0.0
      %841 = vmatprep.mubr.f32.mxu0 0.0
      %842 = vmatmul.mubr.f32.gmra.mrb[0].mxu0 %v772
      %v843 = vpop.f32.mrb[0].mxu0
      %v844 = vadd.f32 0.0, %v843
      %v845 = vpop.f32.mrb[0].mxu0
      %846 = vmatprep.mubr.f32.mxu0 0.0
      %847 = vmatmul.mubr.f32.gmra.mrb[0].mxu0 %v775
      %v848 = vpop.f32.mrb[0].mxu0
      %v849 = vadd.f32 0.0, %v848
      %v850 = vpop.f32.mrb[0].mxu0
      %851 = vdwg.mxu0
      %v852 = vmax.f32 %v844, 0.0
      %v853 = vmax.f32 %v849, 0.0
      %s854 = scalar_lea.vmem %s170, 48
      %855 = vst.msk [vmem:[%s854] sm:$0xff] %vm480, %v852
      %856 = vst.msk [vmem:[%s854 + $0x8] sm:$0xff] %vm480, %v853
      %p857 = scmp.lt.s32.totalorder %s14, 1
      %s858 = scalar_select %p857, %s14, 1
      %s859 = smul.addr %s858, 8
      %s860 = smul.addr %s859, 8
      %s861 = scalar_lea.vmem %s3, %s860
      // Predicated region
      $region33: #{tpu_custom_call.1} parent=31 // pred_check
        %p862 = pneg %p100
      $region34: #{tpu_custom_call.1} parent=31 // pred_check_branch
        %864 = sbr.rel (%p862) target = $region36
      $region35: #{tpu_custom_call.1} parent=31 // pred_region
        _
      $region36: #{tpu_custom_call.1} parent=31 // pred_fallthru
        _
    $region32: #{tpu_custom_call.1} parent=5 // pred_fallthru
      _
    %p865 = scmp.le.s32.totalorder 2, %s9
    // Predicated region
    $region37: #{tpu_custom_call.1} parent=5 // pred_check
      %p866 = pneg %p865
    $region38: #{tpu_custom_call.1} parent=5 // pred_check_branch
      %868 = sbr.rel (%p866) target = $region40
    $region39: #{tpu_custom_call.1} parent=5 // pred_region
      %s869 = ssub.s32 %s9, 2
      // Predicated region
      $region41: #{tpu_custom_call.1} parent=39 // pred_check
        %p870 = pneg %p106
      $region42: #{tpu_custom_call.1} parent=39 // pred_check_branch
        %872 = sbr.rel (%p870) target = $region44
      $region43: #{tpu_custom_call.1} parent=39 // pred_region
        %p873 = scmp.lt.s32.totalorder %s15, 1
        %s874 = scalar_select %p873, %s15, 1
        %s875 = smul.addr %s874, 8
        %s876 = smul.addr %s875, 8
        %s877 = scalar_lea.vmem %s3, %s876
      $region44: #{tpu_custom_call.1} parent=39 // pred_fallthru
        _
    $region40: #{tpu_custom_call.1} parent=5 // pred_fallthru
      _
  $region6: #{tpu_custom_call.1} parent=0 // loop_footer
    %s13 = sadd.s32 1, %s9
  $region7: #{tpu_custom_call.1} parent=0 // loop_footer_branch
    %8 = sbr.rel target = $region3
  $region8: #{tpu_custom_call.1} parent=0 // loop_exit
    _

</llo_original>
